<compile_context>
chip_gen: v5e
topology: v5e:2x2
jax: 0.10.0
libtpu: 0.0.40
codegen_flags: <defaults>
</compile_context>

<pallas_src>
import jax
import jax.numpy as jnp
from jax.experimental import pallas as pl
from jax.experimental.pallas import tpu as pltpu

_MAX_TILE_ROWS = 512          # per perf review: 256-512-row tiles
_SMALL_TILE = 32              # below this, fully unroll + per-copy waits
_GATHER_UNROLL = 8            # fori_loop unroll for large gather loops
_VMEM_TILE_BUDGET = 36 * 1024 * 1024   # ~6x tile_bytes must fit here


def _pick_tile_rows(seq_len, emb_dim, itemsize):
    """Largest multiple-of-8 power-of-two divisor of S within the budgets."""
    rows_by_vmem = _VMEM_TILE_BUDGET // (6 * emb_dim * itemsize)
    cap = min(_MAX_TILE_ROWS, seq_len, max(8, rows_by_vmem))
    best = 8
    t = 16
    while t <= cap:
        if seq_len % t == 0:
            best = t
        t *= 2
    return best


def _make_kernel(tile_p, seq_len):
    def token_pos_embed_kernel(ids_ref, tok_hbm, pos_ref, out_ref,
                               tok_buf, sems):
        # ids_ref : (B*S,)            int32  SMEM (scalar prefetch)
        # tok_hbm : (V, D)            f32    HBM (memory_space=ANY)
        # pos_ref : (tile_p, D)       f32    VMEM (resident across the b loop)
        # out_ref : (1, tile_p, D)    f32    VMEM (pipelined output block)
        # tok_buf : (2, tile_p, D)    f32    VMEM gather double-buffer
        # sems    : (2,)              DMA semaphores (one per slot)
        p = pl.program_id(0)
        b = pl.program_id(1)
        num_b = pl.num_programs(1)
        slot = b % 2

        def start_row_copy(j, row, slot_):
            pltpu.make_async_copy(
                tok_hbm.at[pl.ds(row, 1)],           # (1, D) row in HBM
                tok_buf.at[slot_, pl.ds(j, 1)],      # (1, D) slot row in VMEM
                sems.at[slot_],
            ).start()

        def issue_gather(batch, slot_):
            # Gather the tile_p token rows of tile (p, batch) into slot_.
            base = batch * seq_len + p * tile_p
            if tile_p <= _SMALL_TILE:
                for j in range(tile_p):              # small: static unroll
                    start_row_copy(j, ids_ref[base + j], slot_)
            else:
                def body(j, carry):                  # large: bounded unroll
                    start_row_copy(j, ids_ref[base + j], slot_)
                    return carry
                jax.lax.fori_loop(0, tile_p, body, 0, unroll=_GATHER_UNROLL)

        def wait_gather(slot_):
            if tile_p <= _SMALL_TILE:
                # Per-row waits (trivially cheap at this size).
                for j in range(tile_p):
                    pltpu.make_async_copy(
                        tok_buf.at[slot_, pl.ds(j, 1)],
                        tok_buf.at[slot_, pl.ds(j, 1)],
                        sems.at[slot_],
                    ).wait()
            else:
                # One wait for all row copies of this slot: DMA semaphores
                # count bytes, so a descriptor spanning the whole slot waits
                # for tile_p * D * itemsize bytes in a single operation.
                pltpu.make_async_copy(
                    tok_buf.at[slot_], tok_buf.at[slot_], sems.at[slot_],
                ).wait()

        # Prime the gather pipeline at the start of every p-row.
        @pl.when(b == 0)
        def _():
            issue_gather(0, 0)

        # Prefetch the NEXT batch's tile (same p) before waiting on ours, so
        # its row DMAs overlap this step's wait + add + output writeback.
        # Scalar SMEM reads for the prefetch happen before any .wait().
        @pl.when(b + 1 < num_b)
        def _():
            issue_gather(b + 1, 1 - slot)

        wait_gather(slot)

        out_ref[0] = tok_buf[slot] + pos_ref[...]

    return token_pos_embed_kernel


@jax.jit
def token_and_positional_embedding(ids, token_table, pos_table):
    B, S = ids.shape
    V, D = token_table.shape
    S_max, D2 = pos_table.shape
    assert D == D2, "embedding dims must match"
    assert token_table.dtype == pos_table.dtype, "embedding tables must share a dtype"
    assert S <= S_max, "sequence longer than max_seq_len"
    assert D % 128 == 0, "embedding_dim must be lane-dense (multiple of 128)"
    assert S % 8 == 0, "seq_len must be a multiple of 8 for sublane tiling"

    itemsize = jnp.dtype(token_table.dtype).itemsize
    tile_p = _pick_tile_rows(S, D, itemsize)
    P = S // tile_p

    # VMEM footprint: double-buffered pos + out blocks + 2-slot gather scratch.
    tile_bytes = tile_p * D * itemsize
    vmem_limit = max(6 * tile_bytes + (2 << 20), 16 * 1024 * 1024)

    # Clamp ids: PyTorch nn.Embedding errors on OOB ids; an unchecked DMA
    # gather would read an arbitrary row, so clamp defensively (valid ids are
    # unchanged).  Flat 1-D layout keeps SMEM padding minimal; for extremely
    # large B*S the ids prefetch could be chunked instead.
    ids_flat = jnp.clip(ids.astype(jnp.int32), 0, V - 1).reshape(B * S)

    grid_spec = pltpu.PrefetchScalarGridSpec(
        num_scalar_prefetch=1,                       # ids -> SMEM
        grid=(P, B),                                 # p outer, b inner
        in_specs=[
            # Token table stays in HBM; rows are gathered manually by DMA.
            pl.BlockSpec(memory_space=pl.ANY),
            # Positional block depends only on p -> stays resident across b.
            pl.BlockSpec((tile_p, D), lambda p, b, ids: (p, 0)),
        ],
        out_specs=pl.BlockSpec((1, tile_p, D), lambda p, b, ids: (b, p, 0)),
        scratch_shapes=[
            pltpu.VMEM((2, tile_p, D), token_table.dtype),   # gather slots
            pltpu.SemaphoreType.DMA((2,)),                   # one sem / slot
        ],
    )

    out = pl.pallas_call(
        _make_kernel(tile_p, S),
        out_shape=jax.ShapeDtypeStruct((B, S, D), token_table.dtype),
        grid_spec=grid_spec,
        compiler_params=pltpu.CompilerParams(
            # p-tiles are independent -> v7x can shard them over its 2 TCs;
            # the batch axis carries the gather double-buffer, so "arbitrary".
            dimension_semantics=("parallel", "arbitrary"),
            vmem_limit_bytes=int(vmem_limit),
        ),
    )(ids_flat, token_table, pos_table)

    return out


if __name__ == "__main__":
    # Small, deterministic synthetic config (matches the module's __init__).
    vocab_size = 32
    max_seq_len = 16
    embedding_dim = 128
    batch_size = 2
    seq_len = 8

    key = jax.random.PRNGKey(0)
    k_tok, k_pos, k_ids = jax.random.split(key, 3)

    # nn.Embedding default init: N(0, 1)
    token_table = jax.random.normal(
        k_tok, (vocab_size, embedding_dim), dtype=jnp.float32)
    pos_table = jax.random.normal(
        k_pos, (max_seq_len, embedding_dim), dtype=jnp.float32)
    ids = jax.random.randint(
        k_ids, (batch_size, seq_len), 0, vocab_size, dtype=jnp.int32)

    out = token_and_positional_embedding(ids, token_table, pos_table)
    out = jax.block_until_ready(out)

    # Reference (plain JAX) check of forward semantics.
    ref = token_table[ids] + pos_table[jnp.arange(seq_len)][None, :, :]
    assert out.shape == (batch_size, seq_len, embedding_dim)
    assert out.dtype == jnp.float32
    assert jnp.allclose(out, ref, atol=1e-5, rtol=1e-5)

    print("KERNEL_OK")
</pallas_src>

<mosaic_0001>
module attributes {stable_mosaic.version = 11 : i64} {
  func.func @token_pos_embed_kernel(%arg0: i32, %arg1: i32, %arg2: memref<16xi32, #tpu.memory_space<smem>>, %arg3: memref<32x128xf32, #tpu.memory_space<any>>, %arg4: memref<8x128xf32, #tpu.memory_space<vmem>>, %arg5: memref<1x8x128xf32, #tpu.memory_space<vmem>>, %arg6: memref<2x8x128xf32, #tpu.memory_space<vmem>>, %arg7: memref<2x!tpu.dma_semaphore, #tpu.memory_space<semaphore_mem>>) attributes {dimension_semantics = [#tpu.dimension_semantics<parallel>, #tpu.dimension_semantics<arbitrary>], iteration_bounds = array<i64: 1, 2>, scalar_prefetch = 1 : i64, scratch_operands = 2 : i64, tpu.core_type = #tpu.core_type<tc>, window_params = [{}, {transform_indices = @transform_1, window_bounds = array<i64: 8, 128>}, {transform_indices = @transform_2, window_bounds = array<i64: 1, 8, 128>}]} {
    %c2_i32 = arith.constant 2 : i32
    %c0_i32 = arith.constant 0 : i32
    %0 = arith.cmpi eq, %c2_i32, %c0_i32 : i32
    %c1_i32 = arith.constant 1 : i32
    %1 = arith.select %0, %c1_i32, %c2_i32 : i32
    %2 = arith.remsi %arg1, %1 : i32
    %c0_i32_0 = arith.constant 0 : i32
    %3 = arith.cmpi ne, %2, %c0_i32_0 : i32
    %c0_i32_1 = arith.constant 0 : i32
    %4 = arith.cmpi slt, %2, %c0_i32_1 : i32
    %c0_i32_2 = arith.constant 0 : i32
    %5 = arith.cmpi slt, %1, %c0_i32_2 : i32
    %6 = arith.xori %4, %5 : i1
    %7 = arith.andi %6, %3 : i1
    %8 = arith.addi %2, %1 : i32
    %9 = arith.select %7, %8, %2 : i32
    %c0_i32_3 = arith.constant 0 : i32
    %10 = arith.cmpi eq, %arg1, %c0_i32_3 : i32
    %11 = arith.extui %10 : i1 to i32
    %c0_i32_4 = arith.constant 0 : i32
    %12 = arith.cmpi ne, %11, %c0_i32_4 : i32
    scf.if %12 {
      %c8_i32 = arith.constant 8 : i32
      %73 = arith.muli %arg0, %c8_i32 : i32
      %c0_i32_41 = arith.constant 0 : i32
      %74 = arith.addi %c0_i32_41, %73 : i32
      %c0_i32_42 = arith.constant 0 : i32
      %75 = arith.addi %74, %c0_i32_42 : i32
      %76 = arith.index_cast %75 : i32 to index
      %77 = memref.load %arg2[%76] : memref<16xi32, #tpu.memory_space<smem>>
      %c0_i32_43 = arith.constant 0 : i32
      %c0_i32_44 = arith.constant 0 : i32
      %c0_i32_45 = arith.constant 0 : i32
      %78 = tpu.memref_slice %arg3[%77, %c0_i32_45] : memref<32x128xf32, #tpu.memory_space<any>> -> memref<1x128xf32, #tpu.memory_space<any>>
      %c0_i32_46 = arith.constant 0 : i32
      %c0_i32_47 = arith.constant 0 : i32
      %79 = tpu.memref_slice %arg6[%c0_i32_43, %c0_i32_46, %c0_i32_47] : memref<2x8x128xf32, #tpu.memory_space<vmem>> -> memref<1x1x128xf32, #tpu.memory_space<vmem>>
      %80 = tpu.memref_squeeze %79 : memref<1x1x128xf32, #tpu.memory_space<vmem>> -> memref<1x128xf32, #tpu.memory_space<vmem>>
      %81 = tpu.memref_slice %arg7[%c0_i32_44] : memref<2x!tpu.dma_semaphore, #tpu.memory_space<semaphore_mem>> -> memref<1x!tpu.dma_semaphore, #tpu.memory_space<semaphore_mem>>
      %82 = tpu.memref_squeeze %81 : memref<1x!tpu.dma_semaphore, #tpu.memory_space<semaphore_mem>> -> memref<!tpu.dma_semaphore, #tpu.memory_space<semaphore_mem>>
      tpu.enqueue_dma source(%78 : memref<1x128xf32, #tpu.memory_space<any>>) target(%80 : memref<1x128xf32, #tpu.memory_space<vmem>>) target_semaphore(%82 : memref<!tpu.dma_semaphore, #tpu.memory_space<semaphore_mem>>)
      %c1_i32_48 = arith.constant 1 : i32
      %83 = arith.addi %74, %c1_i32_48 : i32
      %84 = arith.index_cast %83 : i32 to index
      %85 = memref.load %arg2[%84] : memref<16xi32, #tpu.memory_space<smem>>
      %c0_i32_49 = arith.constant 0 : i32
      %c0_i32_50 = arith.constant 0 : i32
      %c0_i32_51 = arith.constant 0 : i32
      %86 = tpu.memref_slice %arg3[%85, %c0_i32_51] : memref<32x128xf32, #tpu.memory_space<any>> -> memref<1x128xf32, #tpu.memory_space<any>>
      %c1_i32_52 = arith.constant 1 : i32
      %c0_i32_53 = arith.constant 0 : i32
      %87 = tpu.memref_slice %arg6[%c0_i32_49, %c1_i32_52, %c0_i32_53] : memref<2x8x128xf32, #tpu.memory_space<vmem>> -> memref<1x1x128xf32, #tpu.memory_space<vmem>>
      %88 = tpu.memref_squeeze %87 : memref<1x1x128xf32, #tpu.memory_space<vmem>> -> memref<1x128xf32, #tpu.memory_space<vmem>>
      %89 = tpu.memref_slice %arg7[%c0_i32_50] : memref<2x!tpu.dma_semaphore, #tpu.memory_space<semaphore_mem>> -> memref<1x!tpu.dma_semaphore, #tpu.memory_space<semaphore_mem>>
      %90 = tpu.memref_squeeze %89 : memref<1x!tpu.dma_semaphore, #tpu.memory_space<semaphore_mem>> -> memref<!tpu.dma_semaphore, #tpu.memory_space<semaphore_mem>>
      tpu.enqueue_dma source(%86 : memref<1x128xf32, #tpu.memory_space<any>>) target(%88 : memref<1x128xf32, #tpu.memory_space<vmem>>) target_semaphore(%90 : memref<!tpu.dma_semaphore, #tpu.memory_space<semaphore_mem>>)
      %c2_i32_54 = arith.constant 2 : i32
      %91 = arith.addi %74, %c2_i32_54 : i32
      %92 = arith.index_cast %91 : i32 to index
      %93 = memref.load %arg2[%92] : memref<16xi32, #tpu.memory_space<smem>>
      %c0_i32_55 = arith.constant 0 : i32
      %c0_i32_56 = arith.constant 0 : i32
      %c0_i32_57 = arith.constant 0 : i32
      %94 = tpu.memref_slice %arg3[%93, %c0_i32_57] : memref<32x128xf32, #tpu.memory_space<any>> -> memref<1x128xf32, #tpu.memory_space<any>>
      %c2_i32_58 = arith.constant 2 : i32
      %c0_i32_59 = arith.constant 0 : i32
      %95 = tpu.memref_slice %arg6[%c0_i32_55, %c2_i32_58, %c0_i32_59] : memref<2x8x128xf32, #tpu.memory_space<vmem>> -> memref<1x1x128xf32, #tpu.memory_space<vmem>>
      %96 = tpu.memref_squeeze %95 : memref<1x1x128xf32, #tpu.memory_space<vmem>> -> memref<1x128xf32, #tpu.memory_space<vmem>>
      %97 = tpu.memref_slice %arg7[%c0_i32_56] : memref<2x!tpu.dma_semaphore, #tpu.memory_space<semaphore_mem>> -> memref<1x!tpu.dma_semaphore, #tpu.memory_space<semaphore_mem>>
      %98 = tpu.memref_squeeze %97 : memref<1x!tpu.dma_semaphore, #tpu.memory_space<semaphore_mem>> -> memref<!tpu.dma_semaphore, #tpu.memory_space<semaphore_mem>>
      tpu.enqueue_dma source(%94 : memref<1x128xf32, #tpu.memory_space<any>>) target(%96 : memref<1x128xf32, #tpu.memory_space<vmem>>) target_semaphore(%98 : memref<!tpu.dma_semaphore, #tpu.memory_space<semaphore_mem>>)
      %c3_i32_60 = arith.constant 3 : i32
      %99 = arith.addi %74, %c3_i32_60 : i32
      %100 = arith.index_cast %99 : i32 to index
      %101 = memref.load %arg2[%100] : memref<16xi32, #tpu.memory_space<smem>>
      %c0_i32_61 = arith.constant 0 : i32
      %c0_i32_62 = arith.constant 0 : i32
      %c0_i32_63 = arith.constant 0 : i32
      %102 = tpu.memref_slice %arg3[%101, %c0_i32_63] : memref<32x128xf32, #tpu.memory_space<any>> -> memref<1x128xf32, #tpu.memory_space<any>>
      %c3_i32_64 = arith.constant 3 : i32
      %c0_i32_65 = arith.constant 0 : i32
      %103 = tpu.memref_slice %arg6[%c0_i32_61, %c3_i32_64, %c0_i32_65] : memref<2x8x128xf32, #tpu.memory_space<vmem>> -> memref<1x1x128xf32, #tpu.memory_space<vmem>>
      %104 = tpu.memref_squeeze %103 : memref<1x1x128xf32, #tpu.memory_space<vmem>> -> memref<1x128xf32, #tpu.memory_space<vmem>>
      %105 = tpu.memref_slice %arg7[%c0_i32_62] : memref<2x!tpu.dma_semaphore, #tpu.memory_space<semaphore_mem>> -> memref<1x!tpu.dma_semaphore, #tpu.memory_space<semaphore_mem>>
      %106 = tpu.memref_squeeze %105 : memref<1x!tpu.dma_semaphore, #tpu.memory_space<semaphore_mem>> -> memref<!tpu.dma_semaphore, #tpu.memory_space<semaphore_mem>>
      tpu.enqueue_dma source(%102 : memref<1x128xf32, #tpu.memory_space<any>>) target(%104 : memref<1x128xf32, #tpu.memory_space<vmem>>) target_semaphore(%106 : memref<!tpu.dma_semaphore, #tpu.memory_space<semaphore_mem>>)
      %c4_i32_66 = arith.constant 4 : i32
      %107 = arith.addi %74, %c4_i32_66 : i32
      %108 = arith.index_cast %107 : i32 to index
      %109 = memref.load %arg2[%108] : memref<16xi32, #tpu.memory_space<smem>>
      %c0_i32_67 = arith.constant 0 : i32
      %c0_i32_68 = arith.constant 0 : i32
      %c0_i32_69 = arith.constant 0 : i32
      %110 = tpu.memref_slice %arg3[%109, %c0_i32_69] : memref<32x128xf32, #tpu.memory_space<any>> -> memref<1x128xf32, #tpu.memory_space<any>>
      %c4_i32_70 = arith.constant 4 : i32
      %c0_i32_71 = arith.constant 0 : i32
      %111 = tpu.memref_slice %arg6[%c0_i32_67, %c4_i32_70, %c0_i32_71] : memref<2x8x128xf32, #tpu.memory_space<vmem>> -> memref<1x1x128xf32, #tpu.memory_space<vmem>>
      %112 = tpu.memref_squeeze %111 : memref<1x1x128xf32, #tpu.memory_space<vmem>> -> memref<1x128xf32, #tpu.memory_space<vmem>>
      %113 = tpu.memref_slice %arg7[%c0_i32_68] : memref<2x!tpu.dma_semaphore, #tpu.memory_space<semaphore_mem>> -> memref<1x!tpu.dma_semaphore, #tpu.memory_space<semaphore_mem>>
      %114 = tpu.memref_squeeze %113 : memref<1x!tpu.dma_semaphore, #tpu.memory_space<semaphore_mem>> -> memref<!tpu.dma_semaphore, #tpu.memory_space<semaphore_mem>>
      tpu.enqueue_dma source(%110 : memref<1x128xf32, #tpu.memory_space<any>>) target(%112 : memref<1x128xf32, #tpu.memory_space<vmem>>) target_semaphore(%114 : memref<!tpu.dma_semaphore, #tpu.memory_space<semaphore_mem>>)
      %c5_i32_72 = arith.constant 5 : i32
      %115 = arith.addi %74, %c5_i32_72 : i32
      %116 = arith.index_cast %115 : i32 to index
      %117 = memref.load %arg2[%116] : memref<16xi32, #tpu.memory_space<smem>>
      %c0_i32_73 = arith.constant 0 : i32
      %c0_i32_74 = arith.constant 0 : i32
      %c0_i32_75 = arith.constant 0 : i32
      %118 = tpu.memref_slice %arg3[%117, %c0_i32_75] : memref<32x128xf32, #tpu.memory_space<any>> -> memref<1x128xf32, #tpu.memory_space<any>>
      %c5_i32_76 = arith.constant 5 : i32
      %c0_i32_77 = arith.constant 0 : i32
      %119 = tpu.memref_slice %arg6[%c0_i32_73, %c5_i32_76, %c0_i32_77] : memref<2x8x128xf32, #tpu.memory_space<vmem>> -> memref<1x1x128xf32, #tpu.memory_space<vmem>>
      %120 = tpu.memref_squeeze %119 : memref<1x1x128xf32, #tpu.memory_space<vmem>> -> memref<1x128xf32, #tpu.memory_space<vmem>>
      %121 = tpu.memref_slice %arg7[%c0_i32_74] : memref<2x!tpu.dma_semaphore, #tpu.memory_space<semaphore_mem>> -> memref<1x!tpu.dma_semaphore, #tpu.memory_space<semaphore_mem>>
      %122 = tpu.memref_squeeze %121 : memref<1x!tpu.dma_semaphore, #tpu.memory_space<semaphore_mem>> -> memref<!tpu.dma_semaphore, #tpu.memory_space<semaphore_mem>>
      tpu.enqueue_dma source(%118 : memref<1x128xf32, #tpu.memory_space<any>>) target(%120 : memref<1x128xf32, #tpu.memory_space<vmem>>) target_semaphore(%122 : memref<!tpu.dma_semaphore, #tpu.memory_space<semaphore_mem>>)
      %c6_i32_78 = arith.constant 6 : i32
      %123 = arith.addi %74, %c6_i32_78 : i32
      %124 = arith.index_cast %123 : i32 to index
      %125 = memref.load %arg2[%124] : memref<16xi32, #tpu.memory_space<smem>>
      %c0_i32_79 = arith.constant 0 : i32
      %c0_i32_80 = arith.constant 0 : i32
      %c0_i32_81 = arith.constant 0 : i32
      %126 = tpu.memref_slice %arg3[%125, %c0_i32_81] : memref<32x128xf32, #tpu.memory_space<any>> -> memref<1x128xf32, #tpu.memory_space<any>>
      %c6_i32_82 = arith.constant 6 : i32
      %c0_i32_83 = arith.constant 0 : i32
      %127 = tpu.memref_slice %arg6[%c0_i32_79, %c6_i32_82, %c0_i32_83] : memref<2x8x128xf32, #tpu.memory_space<vmem>> -> memref<1x1x128xf32, #tpu.memory_space<vmem>>
      %128 = tpu.memref_squeeze %127 : memref<1x1x128xf32, #tpu.memory_space<vmem>> -> memref<1x128xf32, #tpu.memory_space<vmem>>
      %129 = tpu.memref_slice %arg7[%c0_i32_80] : memref<2x!tpu.dma_semaphore, #tpu.memory_space<semaphore_mem>> -> memref<1x!tpu.dma_semaphore, #tpu.memory_space<semaphore_mem>>
      %130 = tpu.memref_squeeze %129 : memref<1x!tpu.dma_semaphore, #tpu.memory_space<semaphore_mem>> -> memref<!tpu.dma_semaphore, #tpu.memory_space<semaphore_mem>>
      tpu.enqueue_dma source(%126 : memref<1x128xf32, #tpu.memory_space<any>>) target(%128 : memref<1x128xf32, #tpu.memory_space<vmem>>) target_semaphore(%130 : memref<!tpu.dma_semaphore, #tpu.memory_space<semaphore_mem>>)
      %c7_i32_84 = arith.constant 7 : i32
      %131 = arith.addi %74, %c7_i32_84 : i32
      %132 = arith.index_cast %131 : i32 to index
      %133 = memref.load %arg2[%132] : memref<16xi32, #tpu.memory_space<smem>>
      %c0_i32_85 = arith.constant 0 : i32
      %c0_i32_86 = arith.constant 0 : i32
      %c0_i32_87 = arith.constant 0 : i32
      %134 = tpu.memref_slice %arg3[%133, %c0_i32_87] : memref<32x128xf32, #tpu.memory_space<any>> -> memref<1x128xf32, #tpu.memory_space<any>>
      %c7_i32_88 = arith.constant 7 : i32
      %c0_i32_89 = arith.constant 0 : i32
      %135 = tpu.memref_slice %arg6[%c0_i32_85, %c7_i32_88, %c0_i32_89] : memref<2x8x128xf32, #tpu.memory_space<vmem>> -> memref<1x1x128xf32, #tpu.memory_space<vmem>>
      %136 = tpu.memref_squeeze %135 : memref<1x1x128xf32, #tpu.memory_space<vmem>> -> memref<1x128xf32, #tpu.memory_space<vmem>>
      %137 = tpu.memref_slice %arg7[%c0_i32_86] : memref<2x!tpu.dma_semaphore, #tpu.memory_space<semaphore_mem>> -> memref<1x!tpu.dma_semaphore, #tpu.memory_space<semaphore_mem>>
      %138 = tpu.memref_squeeze %137 : memref<1x!tpu.dma_semaphore, #tpu.memory_space<semaphore_mem>> -> memref<!tpu.dma_semaphore, #tpu.memory_space<semaphore_mem>>
      tpu.enqueue_dma source(%134 : memref<1x128xf32, #tpu.memory_space<any>>) target(%136 : memref<1x128xf32, #tpu.memory_space<vmem>>) target_semaphore(%138 : memref<!tpu.dma_semaphore, #tpu.memory_space<semaphore_mem>>)
    } else {
    }
    %c1_i32_5 = arith.constant 1 : i32
    %13 = arith.addi %arg1, %c1_i32_5 : i32
    %c2_i32_6 = arith.constant 2 : i32
    %14 = arith.cmpi slt, %13, %c2_i32_6 : i32
    %15 = arith.extui %14 : i1 to i32
    %c0_i32_7 = arith.constant 0 : i32
    %16 = arith.cmpi ne, %15, %c0_i32_7 : i32
    scf.if %16 {
      %c1_i32_41 = arith.constant 1 : i32
      %73 = arith.addi %arg1, %c1_i32_41 : i32
      %c1_i32_42 = arith.constant 1 : i32
      %74 = arith.subi %c1_i32_42, %9 : i32
      %c8_i32 = arith.constant 8 : i32
      %75 = arith.muli %73, %c8_i32 : i32
      %c8_i32_43 = arith.constant 8 : i32
      %76 = arith.muli %arg0, %c8_i32_43 : i32
      %77 = arith.addi %75, %76 : i32
      %c0_i32_44 = arith.constant 0 : i32
      %78 = arith.addi %77, %c0_i32_44 : i32
      %79 = arith.index_cast %78 : i32 to index
      %80 = memref.load %arg2[%79] : memref<16xi32, #tpu.memory_space<smem>>
      %c0_i32_45 = arith.constant 0 : i32
      %81 = tpu.memref_slice %arg3[%80, %c0_i32_45] : memref<32x128xf32, #tpu.memory_space<any>> -> memref<1x128xf32, #tpu.memory_space<any>>
      %c0_i32_46 = arith.constant 0 : i32
      %c0_i32_47 = arith.constant 0 : i32
      %82 = tpu.memref_slice %arg6[%74, %c0_i32_46, %c0_i32_47] : memref<2x8x128xf32, #tpu.memory_space<vmem>> -> memref<1x1x128xf32, #tpu.memory_space<vmem>>
      %83 = tpu.memref_squeeze %82 : memref<1x1x128xf32, #tpu.memory_space<vmem>> -> memref<1x128xf32, #tpu.memory_space<vmem>>
      %84 = tpu.memref_slice %arg7[%74] : memref<2x!tpu.dma_semaphore, #tpu.memory_space<semaphore_mem>> -> memref<1x!tpu.dma_semaphore, #tpu.memory_space<semaphore_mem>>
      %85 = tpu.memref_squeeze %84 : memref<1x!tpu.dma_semaphore, #tpu.memory_space<semaphore_mem>> -> memref<!tpu.dma_semaphore, #tpu.memory_space<semaphore_mem>>
      tpu.enqueue_dma source(%81 : memref<1x128xf32, #tpu.memory_space<any>>) target(%83 : memref<1x128xf32, #tpu.memory_space<vmem>>) target_semaphore(%85 : memref<!tpu.dma_semaphore, #tpu.memory_space<semaphore_mem>>)
      %c1_i32_48 = arith.constant 1 : i32
      %86 = arith.addi %77, %c1_i32_48 : i32
      %87 = arith.index_cast %86 : i32 to index
      %88 = memref.load %arg2[%87] : memref<16xi32, #tpu.memory_space<smem>>
      %c0_i32_49 = arith.constant 0 : i32
      %89 = tpu.memref_slice %arg3[%88, %c0_i32_49] : memref<32x128xf32, #tpu.memory_space<any>> -> memref<1x128xf32, #tpu.memory_space<any>>
      %c1_i32_50 = arith.constant 1 : i32
      %c0_i32_51 = arith.constant 0 : i32
      %90 = tpu.memref_slice %arg6[%74, %c1_i32_50, %c0_i32_51] : memref<2x8x128xf32, #tpu.memory_space<vmem>> -> memref<1x1x128xf32, #tpu.memory_space<vmem>>
      %91 = tpu.memref_squeeze %90 : memref<1x1x128xf32, #tpu.memory_space<vmem>> -> memref<1x128xf32, #tpu.memory_space<vmem>>
      %92 = tpu.memref_slice %arg7[%74] : memref<2x!tpu.dma_semaphore, #tpu.memory_space<semaphore_mem>> -> memref<1x!tpu.dma_semaphore, #tpu.memory_space<semaphore_mem>>
      %93 = tpu.memref_squeeze %92 : memref<1x!tpu.dma_semaphore, #tpu.memory_space<semaphore_mem>> -> memref<!tpu.dma_semaphore, #tpu.memory_space<semaphore_mem>>
      tpu.enqueue_dma source(%89 : memref<1x128xf32, #tpu.memory_space<any>>) target(%91 : memref<1x128xf32, #tpu.memory_space<vmem>>) target_semaphore(%93 : memref<!tpu.dma_semaphore, #tpu.memory_space<semaphore_mem>>)
      %c2_i32_52 = arith.constant 2 : i32
      %94 = arith.addi %77, %c2_i32_52 : i32
      %95 = arith.index_cast %94 : i32 to index
      %96 = memref.load %arg2[%95] : memref<16xi32, #tpu.memory_space<smem>>
      %c0_i32_53 = arith.constant 0 : i32
      %97 = tpu.memref_slice %arg3[%96, %c0_i32_53] : memref<32x128xf32, #tpu.memory_space<any>> -> memref<1x128xf32, #tpu.memory_space<any>>
      %c2_i32_54 = arith.constant 2 : i32
      %c0_i32_55 = arith.constant 0 : i32
      %98 = tpu.memref_slice %arg6[%74, %c2_i32_54, %c0_i32_55] : memref<2x8x128xf32, #tpu.memory_space<vmem>> -> memref<1x1x128xf32, #tpu.memory_space<vmem>>
      %99 = tpu.memref_squeeze %98 : memref<1x1x128xf32, #tpu.memory_space<vmem>> -> memref<1x128xf32, #tpu.memory_space<vmem>>
      %100 = tpu.memref_slice %arg7[%74] : memref<2x!tpu.dma_semaphore, #tpu.memory_space<semaphore_mem>> -> memref<1x!tpu.dma_semaphore, #tpu.memory_space<semaphore_mem>>
      %101 = tpu.memref_squeeze %100 : memref<1x!tpu.dma_semaphore, #tpu.memory_space<semaphore_mem>> -> memref<!tpu.dma_semaphore, #tpu.memory_space<semaphore_mem>>
      tpu.enqueue_dma source(%97 : memref<1x128xf32, #tpu.memory_space<any>>) target(%99 : memref<1x128xf32, #tpu.memory_space<vmem>>) target_semaphore(%101 : memref<!tpu.dma_semaphore, #tpu.memory_space<semaphore_mem>>)
      %c3_i32_56 = arith.constant 3 : i32
      %102 = arith.addi %77, %c3_i32_56 : i32
      %103 = arith.index_cast %102 : i32 to index
      %104 = memref.load %arg2[%103] : memref<16xi32, #tpu.memory_space<smem>>
      %c0_i32_57 = arith.constant 0 : i32
      %105 = tpu.memref_slice %arg3[%104, %c0_i32_57] : memref<32x128xf32, #tpu.memory_space<any>> -> memref<1x128xf32, #tpu.memory_space<any>>
      %c3_i32_58 = arith.constant 3 : i32
      %c0_i32_59 = arith.constant 0 : i32
      %106 = tpu.memref_slice %arg6[%74, %c3_i32_58, %c0_i32_59] : memref<2x8x128xf32, #tpu.memory_space<vmem>> -> memref<1x1x128xf32, #tpu.memory_space<vmem>>
      %107 = tpu.memref_squeeze %106 : memref<1x1x128xf32, #tpu.memory_space<vmem>> -> memref<1x128xf32, #tpu.memory_space<vmem>>
      %108 = tpu.memref_slice %arg7[%74] : memref<2x!tpu.dma_semaphore, #tpu.memory_space<semaphore_mem>> -> memref<1x!tpu.dma_semaphore, #tpu.memory_space<semaphore_mem>>
      %109 = tpu.memref_squeeze %108 : memref<1x!tpu.dma_semaphore, #tpu.memory_space<semaphore_mem>> -> memref<!tpu.dma_semaphore, #tpu.memory_space<semaphore_mem>>
      tpu.enqueue_dma source(%105 : memref<1x128xf32, #tpu.memory_space<any>>) target(%107 : memref<1x128xf32, #tpu.memory_space<vmem>>) target_semaphore(%109 : memref<!tpu.dma_semaphore, #tpu.memory_space<semaphore_mem>>)
      %c4_i32_60 = arith.constant 4 : i32
      %110 = arith.addi %77, %c4_i32_60 : i32
      %111 = arith.index_cast %110 : i32 to index
      %112 = memref.load %arg2[%111] : memref<16xi32, #tpu.memory_space<smem>>
      %c0_i32_61 = arith.constant 0 : i32
      %113 = tpu.memref_slice %arg3[%112, %c0_i32_61] : memref<32x128xf32, #tpu.memory_space<any>> -> memref<1x128xf32, #tpu.memory_space<any>>
      %c4_i32_62 = arith.constant 4 : i32
      %c0_i32_63 = arith.constant 0 : i32
      %114 = tpu.memref_slice %arg6[%74, %c4_i32_62, %c0_i32_63] : memref<2x8x128xf32, #tpu.memory_space<vmem>> -> memref<1x1x128xf32, #tpu.memory_space<vmem>>
      %115 = tpu.memref_squeeze %114 : memref<1x1x128xf32, #tpu.memory_space<vmem>> -> memref<1x128xf32, #tpu.memory_space<vmem>>
      %116 = tpu.memref_slice %arg7[%74] : memref<2x!tpu.dma_semaphore, #tpu.memory_space<semaphore_mem>> -> memref<1x!tpu.dma_semaphore, #tpu.memory_space<semaphore_mem>>
      %117 = tpu.memref_squeeze %116 : memref<1x!tpu.dma_semaphore, #tpu.memory_space<semaphore_mem>> -> memref<!tpu.dma_semaphore, #tpu.memory_space<semaphore_mem>>
      tpu.enqueue_dma source(%113 : memref<1x128xf32, #tpu.memory_space<any>>) target(%115 : memref<1x128xf32, #tpu.memory_space<vmem>>) target_semaphore(%117 : memref<!tpu.dma_semaphore, #tpu.memory_space<semaphore_mem>>)
      %c5_i32_64 = arith.constant 5 : i32
      %118 = arith.addi %77, %c5_i32_64 : i32
      %119 = arith.index_cast %118 : i32 to index
      %120 = memref.load %arg2[%119] : memref<16xi32, #tpu.memory_space<smem>>
      %c0_i32_65 = arith.constant 0 : i32
      %121 = tpu.memref_slice %arg3[%120, %c0_i32_65] : memref<32x128xf32, #tpu.memory_space<any>> -> memref<1x128xf32, #tpu.memory_space<any>>
      %c5_i32_66 = arith.constant 5 : i32
      %c0_i32_67 = arith.constant 0 : i32
      %122 = tpu.memref_slice %arg6[%74, %c5_i32_66, %c0_i32_67] : memref<2x8x128xf32, #tpu.memory_space<vmem>> -> memref<1x1x128xf32, #tpu.memory_space<vmem>>
      %123 = tpu.memref_squeeze %122 : memref<1x1x128xf32, #tpu.memory_space<vmem>> -> memref<1x128xf32, #tpu.memory_space<vmem>>
      %124 = tpu.memref_slice %arg7[%74] : memref<2x!tpu.dma_semaphore, #tpu.memory_space<semaphore_mem>> -> memref<1x!tpu.dma_semaphore, #tpu.memory_space<semaphore_mem>>
      %125 = tpu.memref_squeeze %124 : memref<1x!tpu.dma_semaphore, #tpu.memory_space<semaphore_mem>> -> memref<!tpu.dma_semaphore, #tpu.memory_space<semaphore_mem>>
      tpu.enqueue_dma source(%121 : memref<1x128xf32, #tpu.memory_space<any>>) target(%123 : memref<1x128xf32, #tpu.memory_space<vmem>>) target_semaphore(%125 : memref<!tpu.dma_semaphore, #tpu.memory_space<semaphore_mem>>)
      %c6_i32_68 = arith.constant 6 : i32
      %126 = arith.addi %77, %c6_i32_68 : i32
      %127 = arith.index_cast %126 : i32 to index
      %128 = memref.load %arg2[%127] : memref<16xi32, #tpu.memory_space<smem>>
      %c0_i32_69 = arith.constant 0 : i32
      %129 = tpu.memref_slice %arg3[%128, %c0_i32_69] : memref<32x128xf32, #tpu.memory_space<any>> -> memref<1x128xf32, #tpu.memory_space<any>>
      %c6_i32_70 = arith.constant 6 : i32
      %c0_i32_71 = arith.constant 0 : i32
      %130 = tpu.memref_slice %arg6[%74, %c6_i32_70, %c0_i32_71] : memref<2x8x128xf32, #tpu.memory_space<vmem>> -> memref<1x1x128xf32, #tpu.memory_space<vmem>>
      %131 = tpu.memref_squeeze %130 : memref<1x1x128xf32, #tpu.memory_space<vmem>> -> memref<1x128xf32, #tpu.memory_space<vmem>>
      %132 = tpu.memref_slice %arg7[%74] : memref<2x!tpu.dma_semaphore, #tpu.memory_space<semaphore_mem>> -> memref<1x!tpu.dma_semaphore, #tpu.memory_space<semaphore_mem>>
      %133 = tpu.memref_squeeze %132 : memref<1x!tpu.dma_semaphore, #tpu.memory_space<semaphore_mem>> -> memref<!tpu.dma_semaphore, #tpu.memory_space<semaphore_mem>>
      tpu.enqueue_dma source(%129 : memref<1x128xf32, #tpu.memory_space<any>>) target(%131 : memref<1x128xf32, #tpu.memory_space<vmem>>) target_semaphore(%133 : memref<!tpu.dma_semaphore, #tpu.memory_space<semaphore_mem>>)
      %c7_i32_72 = arith.constant 7 : i32
      %134 = arith.addi %77, %c7_i32_72 : i32
      %135 = arith.index_cast %134 : i32 to index
      %136 = memref.load %arg2[%135] : memref<16xi32, #tpu.memory_space<smem>>
      %c0_i32_73 = arith.constant 0 : i32
      %137 = tpu.memref_slice %arg3[%136, %c0_i32_73] : memref<32x128xf32, #tpu.memory_space<any>> -> memref<1x128xf32, #tpu.memory_space<any>>
      %c7_i32_74 = arith.constant 7 : i32
      %c0_i32_75 = arith.constant 0 : i32
      %138 = tpu.memref_slice %arg6[%74, %c7_i32_74, %c0_i32_75] : memref<2x8x128xf32, #tpu.memory_space<vmem>> -> memref<1x1x128xf32, #tpu.memory_space<vmem>>
      %139 = tpu.memref_squeeze %138 : memref<1x1x128xf32, #tpu.memory_space<vmem>> -> memref<1x128xf32, #tpu.memory_space<vmem>>
      %140 = tpu.memref_slice %arg7[%74] : memref<2x!tpu.dma_semaphore, #tpu.memory_space<semaphore_mem>> -> memref<1x!tpu.dma_semaphore, #tpu.memory_space<semaphore_mem>>
      %141 = tpu.memref_squeeze %140 : memref<1x!tpu.dma_semaphore, #tpu.memory_space<semaphore_mem>> -> memref<!tpu.dma_semaphore, #tpu.memory_space<semaphore_mem>>
      tpu.enqueue_dma source(%137 : memref<1x128xf32, #tpu.memory_space<any>>) target(%139 : memref<1x128xf32, #tpu.memory_space<vmem>>) target_semaphore(%141 : memref<!tpu.dma_semaphore, #tpu.memory_space<semaphore_mem>>)
    } else {
    }
    %c0_i32_8 = arith.constant 0 : i32
    %c0_i32_9 = arith.constant 0 : i32
    %17 = tpu.memref_slice %arg6[%9, %c0_i32_8, %c0_i32_9] : memref<2x8x128xf32, #tpu.memory_space<vmem>> -> memref<1x1x128xf32, #tpu.memory_space<vmem>>
    %18 = tpu.memref_squeeze %17 : memref<1x1x128xf32, #tpu.memory_space<vmem>> -> memref<1x128xf32, #tpu.memory_space<vmem>>
    %c0_i32_10 = arith.constant 0 : i32
    %c0_i32_11 = arith.constant 0 : i32
    %19 = tpu.memref_slice %arg6[%9, %c0_i32_10, %c0_i32_11] : memref<2x8x128xf32, #tpu.memory_space<vmem>> -> memref<1x1x128xf32, #tpu.memory_space<vmem>>
    %20 = tpu.memref_squeeze %19 : memref<1x1x128xf32, #tpu.memory_space<vmem>> -> memref<1x128xf32, #tpu.memory_space<vmem>>
    %21 = tpu.memref_slice %arg7[%9] : memref<2x!tpu.dma_semaphore, #tpu.memory_space<semaphore_mem>> -> memref<1x!tpu.dma_semaphore, #tpu.memory_space<semaphore_mem>>
    %22 = tpu.memref_squeeze %21 : memref<1x!tpu.dma_semaphore, #tpu.memory_space<semaphore_mem>> -> memref<!tpu.dma_semaphore, #tpu.memory_space<semaphore_mem>>
    tpu.wait_dma2 semaphore(%22 : memref<!tpu.dma_semaphore, #tpu.memory_space<semaphore_mem>>) src(%18 : memref<1x128xf32, #tpu.memory_space<vmem>>) dst(%20 : memref<1x128xf32, #tpu.memory_space<vmem>>)
    %c1_i32_12 = arith.constant 1 : i32
    %c0_i32_13 = arith.constant 0 : i32
    %23 = tpu.memref_slice %arg6[%9, %c1_i32_12, %c0_i32_13] : memref<2x8x128xf32, #tpu.memory_space<vmem>> -> memref<1x1x128xf32, #tpu.memory_space<vmem>>
    %24 = tpu.memref_squeeze %23 : memref<1x1x128xf32, #tpu.memory_space<vmem>> -> memref<1x128xf32, #tpu.memory_space<vmem>>
    %c1_i32_14 = arith.constant 1 : i32
    %c0_i32_15 = arith.constant 0 : i32
    %25 = tpu.memref_slice %arg6[%9, %c1_i32_14, %c0_i32_15] : memref<2x8x128xf32, #tpu.memory_space<vmem>> -> memref<1x1x128xf32, #tpu.memory_space<vmem>>
    %26 = tpu.memref_squeeze %25 : memref<1x1x128xf32, #tpu.memory_space<vmem>> -> memref<1x128xf32, #tpu.memory_space<vmem>>
    %27 = tpu.memref_slice %arg7[%9] : memref<2x!tpu.dma_semaphore, #tpu.memory_space<semaphore_mem>> -> memref<1x!tpu.dma_semaphore, #tpu.memory_space<semaphore_mem>>
    %28 = tpu.memref_squeeze %27 : memref<1x!tpu.dma_semaphore, #tpu.memory_space<semaphore_mem>> -> memref<!tpu.dma_semaphore, #tpu.memory_space<semaphore_mem>>
    tpu.wait_dma2 semaphore(%28 : memref<!tpu.dma_semaphore, #tpu.memory_space<semaphore_mem>>) src(%24 : memref<1x128xf32, #tpu.memory_space<vmem>>) dst(%26 : memref<1x128xf32, #tpu.memory_space<vmem>>)
    %c2_i32_16 = arith.constant 2 : i32
    %c0_i32_17 = arith.constant 0 : i32
    %29 = tpu.memref_slice %arg6[%9, %c2_i32_16, %c0_i32_17] : memref<2x8x128xf32, #tpu.memory_space<vmem>> -> memref<1x1x128xf32, #tpu.memory_space<vmem>>
    %30 = tpu.memref_squeeze %29 : memref<1x1x128xf32, #tpu.memory_space<vmem>> -> memref<1x128xf32, #tpu.memory_space<vmem>>
    %c2_i32_18 = arith.constant 2 : i32
    %c0_i32_19 = arith.constant 0 : i32
    %31 = tpu.memref_slice %arg6[%9, %c2_i32_18, %c0_i32_19] : memref<2x8x128xf32, #tpu.memory_space<vmem>> -> memref<1x1x128xf32, #tpu.memory_space<vmem>>
    %32 = tpu.memref_squeeze %31 : memref<1x1x128xf32, #tpu.memory_space<vmem>> -> memref<1x128xf32, #tpu.memory_space<vmem>>
    %33 = tpu.memref_slice %arg7[%9] : memref<2x!tpu.dma_semaphore, #tpu.memory_space<semaphore_mem>> -> memref<1x!tpu.dma_semaphore, #tpu.memory_space<semaphore_mem>>
    %34 = tpu.memref_squeeze %33 : memref<1x!tpu.dma_semaphore, #tpu.memory_space<semaphore_mem>> -> memref<!tpu.dma_semaphore, #tpu.memory_space<semaphore_mem>>
    tpu.wait_dma2 semaphore(%34 : memref<!tpu.dma_semaphore, #tpu.memory_space<semaphore_mem>>) src(%30 : memref<1x128xf32, #tpu.memory_space<vmem>>) dst(%32 : memref<1x128xf32, #tpu.memory_space<vmem>>)
    %c3_i32 = arith.constant 3 : i32
    %c0_i32_20 = arith.constant 0 : i32
    %35 = tpu.memref_slice %arg6[%9, %c3_i32, %c0_i32_20] : memref<2x8x128xf32, #tpu.memory_space<vmem>> -> memref<1x1x128xf32, #tpu.memory_space<vmem>>
    %36 = tpu.memref_squeeze %35 : memref<1x1x128xf32, #tpu.memory_space<vmem>> -> memref<1x128xf32, #tpu.memory_space<vmem>>
    %c3_i32_21 = arith.constant 3 : i32
    %c0_i32_22 = arith.constant 0 : i32
    %37 = tpu.memref_slice %arg6[%9, %c3_i32_21, %c0_i32_22] : memref<2x8x128xf32, #tpu.memory_space<vmem>> -> memref<1x1x128xf32, #tpu.memory_space<vmem>>
    %38 = tpu.memref_squeeze %37 : memref<1x1x128xf32, #tpu.memory_space<vmem>> -> memref<1x128xf32, #tpu.memory_space<vmem>>
    %39 = tpu.memref_slice %arg7[%9] : memref<2x!tpu.dma_semaphore, #tpu.memory_space<semaphore_mem>> -> memref<1x!tpu.dma_semaphore, #tpu.memory_space<semaphore_mem>>
    %40 = tpu.memref_squeeze %39 : memref<1x!tpu.dma_semaphore, #tpu.memory_space<semaphore_mem>> -> memref<!tpu.dma_semaphore, #tpu.memory_space<semaphore_mem>>
    tpu.wait_dma2 semaphore(%40 : memref<!tpu.dma_semaphore, #tpu.memory_space<semaphore_mem>>) src(%36 : memref<1x128xf32, #tpu.memory_space<vmem>>) dst(%38 : memref<1x128xf32, #tpu.memory_space<vmem>>)
    %c4_i32 = arith.constant 4 : i32
    %c0_i32_23 = arith.constant 0 : i32
    %41 = tpu.memref_slice %arg6[%9, %c4_i32, %c0_i32_23] : memref<2x8x128xf32, #tpu.memory_space<vmem>> -> memref<1x1x128xf32, #tpu.memory_space<vmem>>
    %42 = tpu.memref_squeeze %41 : memref<1x1x128xf32, #tpu.memory_space<vmem>> -> memref<1x128xf32, #tpu.memory_space<vmem>>
    %c4_i32_24 = arith.constant 4 : i32
    %c0_i32_25 = arith.constant 0 : i32
    %43 = tpu.memref_slice %arg6[%9, %c4_i32_24, %c0_i32_25] : memref<2x8x128xf32, #tpu.memory_space<vmem>> -> memref<1x1x128xf32, #tpu.memory_space<vmem>>
    %44 = tpu.memref_squeeze %43 : memref<1x1x128xf32, #tpu.memory_space<vmem>> -> memref<1x128xf32, #tpu.memory_space<vmem>>
    %45 = tpu.memref_slice %arg7[%9] : memref<2x!tpu.dma_semaphore, #tpu.memory_space<semaphore_mem>> -> memref<1x!tpu.dma_semaphore, #tpu.memory_space<semaphore_mem>>
    %46 = tpu.memref_squeeze %45 : memref<1x!tpu.dma_semaphore, #tpu.memory_space<semaphore_mem>> -> memref<!tpu.dma_semaphore, #tpu.memory_space<semaphore_mem>>
    tpu.wait_dma2 semaphore(%46 : memref<!tpu.dma_semaphore, #tpu.memory_space<semaphore_mem>>) src(%42 : memref<1x128xf32, #tpu.memory_space<vmem>>) dst(%44 : memref<1x128xf32, #tpu.memory_space<vmem>>)
    %c5_i32 = arith.constant 5 : i32
    %c0_i32_26 = arith.constant 0 : i32
    %47 = tpu.memref_slice %arg6[%9, %c5_i32, %c0_i32_26] : memref<2x8x128xf32, #tpu.memory_space<vmem>> -> memref<1x1x128xf32, #tpu.memory_space<vmem>>
    %48 = tpu.memref_squeeze %47 : memref<1x1x128xf32, #tpu.memory_space<vmem>> -> memref<1x128xf32, #tpu.memory_space<vmem>>
    %c5_i32_27 = arith.constant 5 : i32
    %c0_i32_28 = arith.constant 0 : i32
    %49 = tpu.memref_slice %arg6[%9, %c5_i32_27, %c0_i32_28] : memref<2x8x128xf32, #tpu.memory_space<vmem>> -> memref<1x1x128xf32, #tpu.memory_space<vmem>>
    %50 = tpu.memref_squeeze %49 : memref<1x1x128xf32, #tpu.memory_space<vmem>> -> memref<1x128xf32, #tpu.memory_space<vmem>>
    %51 = tpu.memref_slice %arg7[%9] : memref<2x!tpu.dma_semaphore, #tpu.memory_space<semaphore_mem>> -> memref<1x!tpu.dma_semaphore, #tpu.memory_space<semaphore_mem>>
    %52 = tpu.memref_squeeze %51 : memref<1x!tpu.dma_semaphore, #tpu.memory_space<semaphore_mem>> -> memref<!tpu.dma_semaphore, #tpu.memory_space<semaphore_mem>>
    tpu.wait_dma2 semaphore(%52 : memref<!tpu.dma_semaphore, #tpu.memory_space<semaphore_mem>>) src(%48 : memref<1x128xf32, #tpu.memory_space<vmem>>) dst(%50 : memref<1x128xf32, #tpu.memory_space<vmem>>)
    %c6_i32 = arith.constant 6 : i32
    %c0_i32_29 = arith.constant 0 : i32
    %53 = tpu.memref_slice %arg6[%9, %c6_i32, %c0_i32_29] : memref<2x8x128xf32, #tpu.memory_space<vmem>> -> memref<1x1x128xf32, #tpu.memory_space<vmem>>
    %54 = tpu.memref_squeeze %53 : memref<1x1x128xf32, #tpu.memory_space<vmem>> -> memref<1x128xf32, #tpu.memory_space<vmem>>
    %c6_i32_30 = arith.constant 6 : i32
    %c0_i32_31 = arith.constant 0 : i32
    %55 = tpu.memref_slice %arg6[%9, %c6_i32_30, %c0_i32_31] : memref<2x8x128xf32, #tpu.memory_space<vmem>> -> memref<1x1x128xf32, #tpu.memory_space<vmem>>
    %56 = tpu.memref_squeeze %55 : memref<1x1x128xf32, #tpu.memory_space<vmem>> -> memref<1x128xf32, #tpu.memory_space<vmem>>
    %57 = tpu.memref_slice %arg7[%9] : memref<2x!tpu.dma_semaphore, #tpu.memory_space<semaphore_mem>> -> memref<1x!tpu.dma_semaphore, #tpu.memory_space<semaphore_mem>>
    %58 = tpu.memref_squeeze %57 : memref<1x!tpu.dma_semaphore, #tpu.memory_space<semaphore_mem>> -> memref<!tpu.dma_semaphore, #tpu.memory_space<semaphore_mem>>
    tpu.wait_dma2 semaphore(%58 : memref<!tpu.dma_semaphore, #tpu.memory_space<semaphore_mem>>) src(%54 : memref<1x128xf32, #tpu.memory_space<vmem>>) dst(%56 : memref<1x128xf32, #tpu.memory_space<vmem>>)
    %c7_i32 = arith.constant 7 : i32
    %c0_i32_32 = arith.constant 0 : i32
    %59 = tpu.memref_slice %arg6[%9, %c7_i32, %c0_i32_32] : memref<2x8x128xf32, #tpu.memory_space<vmem>> -> memref<1x1x128xf32, #tpu.memory_space<vmem>>
    %60 = tpu.memref_squeeze %59 : memref<1x1x128xf32, #tpu.memory_space<vmem>> -> memref<1x128xf32, #tpu.memory_space<vmem>>
    %c7_i32_33 = arith.constant 7 : i32
    %c0_i32_34 = arith.constant 0 : i32
    %61 = tpu.memref_slice %arg6[%9, %c7_i32_33, %c0_i32_34] : memref<2x8x128xf32, #tpu.memory_space<vmem>> -> memref<1x1x128xf32, #tpu.memory_space<vmem>>
    %62 = tpu.memref_squeeze %61 : memref<1x1x128xf32, #tpu.memory_space<vmem>> -> memref<1x128xf32, #tpu.memory_space<vmem>>
    %63 = tpu.memref_slice %arg7[%9] : memref<2x!tpu.dma_semaphore, #tpu.memory_space<semaphore_mem>> -> memref<1x!tpu.dma_semaphore, #tpu.memory_space<semaphore_mem>>
    %64 = tpu.memref_squeeze %63 : memref<1x!tpu.dma_semaphore, #tpu.memory_space<semaphore_mem>> -> memref<!tpu.dma_semaphore, #tpu.memory_space<semaphore_mem>>
    tpu.wait_dma2 semaphore(%64 : memref<!tpu.dma_semaphore, #tpu.memory_space<semaphore_mem>>) src(%60 : memref<1x128xf32, #tpu.memory_space<vmem>>) dst(%62 : memref<1x128xf32, #tpu.memory_space<vmem>>)
    %65 = arith.index_cast %9 : i32 to index
    %c0 = arith.constant 0 : index
    %c0_35 = arith.constant 0 : index
    %66 = vector.load %arg6[%65, %c0, %c0_35] : memref<2x8x128xf32, #tpu.memory_space<vmem>>, vector<1x8x128xf32>
    %67 = vector.shape_cast %66 : vector<1x8x128xf32> to vector<8x128xf32>
    %c0_36 = arith.constant 0 : index
    %c0_37 = arith.constant 0 : index
    %68 = vector.load %arg4[%c0_36, %c0_37] : memref<8x128xf32, #tpu.memory_space<vmem>>, vector<8x128xf32>
    %69 = arith.addf %67, %68 : vector<8x128xf32>
    %c0_38 = arith.constant 0 : index
    %c0_39 = arith.constant 0 : index
    %c0_40 = arith.constant 0 : index
    %70 = vector.load %arg5[%c0_38, %c0_39, %c0_40] : memref<1x8x128xf32, #tpu.memory_space<vmem>>, vector<1x8x128xf32>
    %71 = vector.shape_cast %70 : vector<1x8x128xf32> to vector<8x128xf32>
    %72 = vector.shape_cast %69 : vector<8x128xf32> to vector<1x8x128xf32>
    tpu.vector_store %arg5[%c0_38, %c0_39, %c0_40], %72 {strides = array<i32>} : memref<1x8x128xf32, #tpu.memory_space<vmem>>, vector<1x8x128xf32>,
    return
  }
  func.func @transform_1(%arg0: i32, %arg1: i32, %arg2: memref<16xi32, #tpu.memory_space<smem>>) -> (i32, i32) {
    %c0_i32 = arith.constant 0 : i32
    %c0_i32_0 = arith.constant 0 : i32
    return %arg0, %c0_i32 : i32, i32
  }
  func.func @transform_2(%arg0: i32, %arg1: i32, %arg2: memref<16xi32, #tpu.memory_space<smem>>) -> (i32, i32, i32) {
    %c0_i32 = arith.constant 0 : i32
    %c0_i32_0 = arith.constant 0 : i32
    return %arg1, %arg0, %c0_i32 : i32, i32, i32
  }
}

</mosaic_0001>

<llo_original>
// kernel: token_and_positional_embedding.1
$region0: #{token_and_positional_embedding.1}
  #allocation0 [shape = 'u32[]', space=smem, size = 0x4, offset = 0x4, fixed_abs, tag = 'smem constant byte address 0x4 - core index']
  #allocation1 [shape = 'u32[72,128]{1,0:T(1,128)}', space=vmem, size = 0x9000, scoped, tag = 'internal scratch']
  #allocation2 [shape = 'f32[2,8,128]{2,1,0:T(8,128)}', space=vmem, size = 0x2000, scoped, tag = 'scratch operand']
  #allocation3 [shape = 's32[2]{0}', space=sflag, size = 0x8, scoped, tag = 'scratch operand']
  #allocation4 [shape = 's32[1]{0}', space=sflag, size = 0x4, scoped, tag = 'scoped memory for token_and_positional_embedding.1']
  #allocation5 [shape = 'u8[512]{0}', space=smem, size = 0x200, scoped, tag = 'prefetched SMEM operand 0']
  #allocation10 [shape = 's32[]', space=sflag, size = 0x4, offset = 0, fixed_abs, tag = 'sflag constant byte address 0x0 - dummy sync flag']
  #allocation11 [shape = 's32[]', space=sflag, size = 0x4, offset = 0, fixed_abs, tag = 'sflag constant byte address 0x0 - dummy sync flag']
  #allocation12 [shape = 'u32[]', space=smem, size = 0x4, offset = 0x44, fixed_abs, tag = 'smem constant byte address 0x44 - assertion arg 0']
  #allocation13 [shape = 'u32[]', space=smem, size = 0x4, offset = 0x48, fixed_abs, tag = 'smem constant byte address 0x48 - assertion arg 1']
  #allocation14 [shape = 's32[]', space=sflag, size = 0x4, offset = 0, fixed_abs, tag = 'sflag constant byte address 0x0 - dummy sync flag']
  #allocation15 [shape = 's32[]', space=sflag, size = 0x4, offset = 0, fixed_abs, tag = 'sflag constant byte address 0x0 - dummy sync flag']
  #allocation16 [shape = 's32[]', space=sflag, size = 0x4, offset = 0, fixed_abs, tag = 'sflag constant byte address 0x0 - dummy sync flag']
  #allocation17 [shape = 's32[]', space=sflag, size = 0x4, offset = 0, fixed_abs, tag = 'sflag constant byte address 0x0 - dummy sync flag']
  #allocation18 [shape = 's32[]', space=sflag, size = 0x4, offset = 0, fixed_abs, tag = 'sflag constant byte address 0x0 - dummy sync flag']
  #allocation19 [shape = 's32[]', space=sflag, size = 0x4, offset = 0, fixed_abs, tag = 'sflag constant byte address 0x0 - dummy sync flag']
  #allocation20 [shape = 's32[]', space=sflag, size = 0x4, offset = 0, fixed_abs, tag = 'sflag constant byte address 0x0 - dummy sync flag']
  #allocation21 [shape = 's32[]', space=sflag, size = 0x4, offset = 0, fixed_abs, tag = 'sflag constant byte address 0x0 - dummy sync flag']
  #allocation22 [shape = 's32[]', space=sflag, size = 0x4, offset = 0, fixed_abs, tag = 'sflag constant byte address 0x0 - dummy sync flag']
  #allocation23 [shape = 's32[]', space=sflag, size = 0x4, offset = 0, fixed_abs, tag = 'sflag constant byte address 0x0 - dummy sync flag']
  #allocation24 [shape = 's32[]', space=sflag, size = 0x4, offset = 0, fixed_abs, tag = 'sflag constant byte address 0x0 - dummy sync flag']
  #allocation25 [shape = 's32[]', space=sflag, size = 0x4, offset = 0, fixed_abs, tag = 'sflag constant byte address 0x0 - dummy sync flag']
  #allocation26 [shape = 's32[]', space=sflag, size = 0x4, offset = 0, fixed_abs, tag = 'sflag constant byte address 0x0 - dummy sync flag']
  #allocation27 [shape = 's32[]', space=sflag, size = 0x4, offset = 0, fixed_abs, tag = 'sflag constant byte address 0x0 - dummy sync flag']
  #allocation28 [shape = 's32[]', space=sflag, size = 0x4, offset = 0, fixed_abs, tag = 'sflag constant byte address 0x0 - dummy sync flag']
  #allocation29 [shape = 's32[]', space=sflag, size = 0x4, offset = 0, fixed_abs, tag = 'sflag constant byte address 0x0 - dummy sync flag']
  #allocation30 [shape = 's32[]', space=sflag, size = 0x4, offset = 0, fixed_abs, tag = 'sflag constant byte address 0x0 - dummy sync flag']
  #allocation31 [shape = 's32[]', space=sflag, size = 0x4, offset = 0, fixed_abs, tag = 'sflag constant byte address 0x0 - dummy sync flag']
  #allocation32 [shape = 's32[]', space=sflag, size = 0x4, offset = 0, fixed_abs, tag = 'sflag constant byte address 0x0 - dummy sync flag']
  #allocation33 [shape = 's32[]', space=sflag, size = 0x4, offset = 0, fixed_abs, tag = 'sflag constant byte address 0x0 - dummy sync flag']
  #allocation34 [shape = 's32[]', space=sflag, size = 0x4, offset = 0, fixed_abs, tag = 'sflag constant byte address 0x0 - dummy sync flag']
  #allocation35 [shape = 's32[]', space=sflag, size = 0x4, offset = 0, fixed_abs, tag = 'sflag constant byte address 0x0 - dummy sync flag']
  #allocation36 [shape = 's32[]', space=sflag, size = 0x4, offset = 0, fixed_abs, tag = 'sflag constant byte address 0x0 - dummy sync flag']
  #allocation37 [shape = 's32[]', space=sflag, size = 0x4, offset = 0, fixed_abs, tag = 'sflag constant byte address 0x0 - dummy sync flag']
  #allocation38 [shape = 's32[]', space=sflag, size = 0x4, offset = 0, fixed_abs, tag = 'sflag constant byte address 0x0 - dummy sync flag']
  #allocation39 [shape = 's32[]', space=sflag, size = 0x4, offset = 0, fixed_abs, tag = 'sflag constant byte address 0x0 - dummy sync flag']
  #allocation40 [shape = 's32[]', space=sflag, size = 0x4, offset = 0, fixed_abs, tag = 'sflag constant byte address 0x0 - dummy sync flag']
  #allocation41 [shape = 's32[]', space=sflag, size = 0x4, offset = 0, fixed_abs, tag = 'sflag constant byte address 0x0 - dummy sync flag']
  #allocation42 [shape = 's32[]', space=sflag, size = 0x4, offset = 0, fixed_abs, tag = 'sflag constant byte address 0x0 - dummy sync flag']
  #allocation43 [shape = 's32[]', space=sflag, size = 0x4, offset = 0, fixed_abs, tag = 'sflag constant byte address 0x0 - dummy sync flag']
  %s0 = inlined_call_operand.vmem [shape: s32[16], index: 0, kind: input, shape index: {}]
  %s1 = inlined_call_operand.hbm [shape: f32[32,128], index: 1, kind: input, shape index: {}]
  %s2 = inlined_call_operand.hbm [shape: f32[16,128], index: 2, kind: input, shape index: {}]
  %s3 = inlined_call_operand.hbm [shape: f32[2,8,128], index: 3, kind: output, shape index: {}]
  %s4 = sld [smem:[#allocation0]]
  $region113: #{token_and_positional_embedding.1} parent=0
    _
  %s6 = ssub.s32 1, %s4
  %s7 = scalar_select 0, %s6, %s4
  %s9 = sshll.u32 %s0, 4
  %s10 = int_to_ptr.vmem [resolvable:$true] %s9
  %12 = dma.vmem_to_smem %s10, 16, [#allocation5], [#allocation4]
  %14 = dma.done [#allocation4], 16
  %15 = sfence
  $region1: #{token_and_positional_embedding.1} parent=0
    #allocation6 [shape = 'u8[4096]{0}', space=vmem, size = 0x1000, scoped, tag = 'input window, operand 2, single buffered']
    #allocation7 [shape = 's32[2]{0}', space=sflag, size = 0x8, scoped, tag = 'scoped memory for token_and_positional_embedding.1']
    #allocation8 [shape = 's32[2]{0}', space=sflag, size = 0x8, scoped, tag = 'scoped memory for token_and_positional_embedding.1']
    #allocation9 [shape = 'u8[8192]{0}', space=vmem, size = 0x2000, scoped, tag = 'output window, operand 0']
    %16 = vsyncpa [#allocation7], 0
    %17 = vsyncpa [#allocation8], 0
    %s18 = scalar_lea.sflag [#allocation8], 1
    %19 = vsyncpa %s18, 0
    loop: start=0, step=1, limit=4
    $region2: #{token_and_positional_embedding.1} parent=1 // loop_pre_header
      _
    $region3: #{token_and_positional_embedding.1} parent=1 // loop_header
      %s21 = sphi 0, %s25
      %p22 = scmp.ge.s32.totalorder %s21, 4
      %s28 = sphi 0, %s40
      %s29 = sphi 0, %s36
      %s30 = sphi 0, %s28
      %s31 = sphi 0, %s29
      %s32 = sphi 0, %s30
      %s33 = sphi 0, %s31
      %s43 = sphi 0, %s45
      %s46 = sphi 0, %s43
      %s47 = sphi 0, %s46
      %s63 = sphi 0, %s47
      %s71 = sphi 0, %s73
      %s74 = sphi 0, %s71
      %s75 = sphi 0, %s74
      %s91 = sphi 0, %s75
    $region4: #{token_and_positional_embedding.1} parent=1 // loop_header_branch
      %24 = sbr.rel (%p22) target = $region8
    $region5: #{token_and_positional_embedding.1} parent=1 // loop_body
      %s26 = ssub.s32 %s21, 1
      %s27 = ssub.s32 %s21, 2
      %s34 = sadd.s32 1, %s29
      %p35 = scmp.ge.s32.totalorder %s34, 2
      %s36 = scalar_select %p35, 0, %s34
      %s37 = sadd.s32 1, %s28
      %s38 = scalar_select %p35, %s37, %s28
      %p39 = scmp.ge.s32.totalorder %s38, 1
      %s40 = scalar_select %p39, 0, %s38
      %s41 = ssub.s32 %s28, %s40
      %p42 = scmp.eq.s32.totalorder %s41, 0
      %s44 = sadd.s32 %s43, 1
      %s45 = scalar_select %p42, %s43, %s44
      %p48 = pneg %p42
      %p49 = scmp.eq.s32.totalorder %s21, 1
      %p50 = por %p48, %p49
      %p51 = scmp.ne.s32.totalorder %s43, %s46
      %p52 = scmp.eq.s32.totalorder %s21, 0
      %p53 = por %p51, %p52
      %p54 = scmp.ne.s32.totalorder %s43, %s46
      %p55 = scmp.eq.s32.totalorder %s26, 1
      %p56 = por %p54, %p55
      %p57 = scmp.ne.s32.totalorder %s46, %s47
      %p58 = scmp.eq.s32.totalorder %s26, 0
      %p59 = por %p57, %p58
      %p60 = scmp.ne.s32.totalorder %s46, %s47
      %p61 = scmp.eq.s32.totalorder %s27, 1
      %p62 = por %p60, %p61
      %p64 = scmp.ne.s32.totalorder %s47, %s63
      %p65 = scmp.eq.s32.totalorder %s27, 0
      %p66 = por %p64, %p65
      %s67 = ssub.s32 %s29, %s36
      %s68 = ssub.s32 %s28, %s40
      %s69 = sor.u32 %s67, %s68
      %p70 = scmp.eq.s32.totalorder %s69, 0
      %s72 = sadd.s32 %s71, 1
      %s73 = scalar_select %p70, %s71, %s72
      %p76 = pneg %p70
      %p77 = scmp.eq.s32.totalorder %s21, 1
      %p78 = por %p76, %p77
      %p79 = scmp.ne.s32.totalorder %s71, %s74
      %p80 = scmp.eq.s32.totalorder %s21, 0
      %p81 = por %p79, %p80
      %p82 = scmp.ne.s32.totalorder %s71, %s74
      %p83 = scmp.eq.s32.totalorder %s26, 1
      %p84 = por %p82, %p83
      %p85 = scmp.ne.s32.totalorder %s74, %s75
      %p86 = scmp.eq.s32.totalorder %s26, 0
      %p87 = por %p85, %p86
      %p88 = scmp.ne.s32.totalorder %s74, %s75
      %p89 = scmp.eq.s32.totalorder %s27, 1
      %p90 = por %p88, %p89
      %p92 = scmp.ne.s32.totalorder %s75, %s91
      %p93 = scmp.eq.s32.totalorder %s27, 0
      %p94 = por %p92, %p93
      %p95 = scmp.le.s32.totalorder 1, %s21
      %p96 = scmp.lt.s32.totalorder %s21, 3
      %p97 = pnand %p95, %p96
      %p98 = pneg %p97
      // Predicated region
      $region9: #{token_and_positional_embedding.1} parent=5 // pred_check
        _
      $region10: #{token_and_positional_embedding.1} parent=5 // pred_check_branch
        %100 = sbr.rel (%p97) target = $region12
      $region11: #{token_and_positional_embedding.1} parent=5 // pred_region
        %s101 = ssub.s32 %s21, 1
        // Predicated region
        $region13: #{token_and_positional_embedding.1} parent=11 // pred_check
          %p102 = pneg %p59
        $region14: #{token_and_positional_embedding.1} parent=11 // pred_check_branch
          %104 = sbr.rel (%p102) target = $region16
        $region15: #{token_and_positional_embedding.1} parent=11 // pred_region
          %106 = vsyncadd [#allocation7], 0
          %s107 = smul.addr %s30, 8
          %s108 = scalar_lea.hbm %s2, %s107
          %s110 = sshll.u32 %s108, 4
          %s111 = int_to_ptr.hbm [resolvable:$true] %s110
          %s112 = sshll.u32 [#allocation6], 4
          %s113 = int_to_ptr.vmem [resolvable:$true] %s112
          %115 = dma.hbm_to_vmem [thread:$0]  %s111, 128, %s113, [#allocation7]
        $region16: #{token_and_positional_embedding.1} parent=11 // pred_fallthru
          _
      $region12: #{token_and_positional_embedding.1} parent=5 // pred_fallthru
        _
      %p116 = scmp.lt.s32.totalorder %s21, 2
      // Predicated region
      $region17: #{token_and_positional_embedding.1} parent=5 // pred_check
        %p117 = pneg %p116
      $region18: #{token_and_positional_embedding.1} parent=5 // pred_check_branch
        %119 = sbr.rel (%p117) target = $region20
      $region19: #{token_and_positional_embedding.1} parent=5 // pred_region
        _
      $region20: #{token_and_positional_embedding.1} parent=5 // pred_fallthru
        _
      %p120 = scmp.le.s32.totalorder 1, %s21
      %p121 = scmp.lt.s32.totalorder %s21, 3
      %p122 = pnand %p120, %p121
      %p123 = pneg %p122
      // Predicated region
      $region21: #{token_and_positional_embedding.1} parent=5 // pred_check
        _
      $region22: #{token_and_positional_embedding.1} parent=5 // pred_check_branch
        %125 = sbr.rel (%p122) target = $region24
      $region23: #{token_and_positional_embedding.1} parent=5 // pred_region
        %s126 = ssub.s32 %s21, 1
        // Predicated region
        $region25: #{token_and_positional_embedding.1} parent=23 // pred_check
          %p127 = pneg %p59
        $region26: #{token_and_positional_embedding.1} parent=23 // pred_check_branch
          %129 = sbr.rel (%p127) target = $region28
        $region27: #{token_and_positional_embedding.1} parent=23 // pred_region
          %131 = dma.done [#allocation7], 128
        $region28: #{token_and_positional_embedding.1} parent=23 // pred_fallthru
          _
        %p132 = pneg %p59
        %p133 = pneg %p56
        %p134 = pneg %p87
        %p135 = pneg %p84
        %s136 = sand.u32 %s74, 1
        %s137 = scalar_lea.sflag [#allocation8], %s136
        %s138 = sand.u32 %s74, 1
        %s139 = smul.addr %s138, 8
        %s140 = scalar_lea.vmem [#allocation9], %s139
        %p141 = scmp.lt.s32.totalorder %s31, 0
        %s142 = ssub.s32 0, %s31
        %s143 = scalar_select %p141, %s142, %s31
        %s144 = sand.u32 %s143, 1
        %s145 = ssub.s32 0, %s144
        %s146 = scalar_select %p141, %s145, %s144
        %p147 = scmp.ne.s32.totalorder %s146, 0
        %p148 = scmp.lt.s32.totalorder %s146, 0
        %p149 = pnand %p148, %p147
        %p150 = pneg %p149
        %s151 = sadd.s32 %s146, 2
        %s152 = scalar_select %p150, %s151, %s146
        %p153 = scmp.eq.s32.totalorder %s31, 0
        // Predicated region
        $region29: #{token_and_positional_embedding.1} parent=23 // pred_check
          %p154 = pneg %p153
        $region30: #{token_and_positional_embedding.1} parent=23 // pred_check_branch
          %156 = sbr.rel (%p154) target = $region32
        $region31: #{token_and_positional_embedding.1} parent=23 // pred_region
          %s157 = smul.u32 %s30, 8
          %s158 = sld [smem:[#allocation5 + %s157]]
          %s159 = scalar_lea.hbm %s1, %s158
          // Predicated region
          $region33: #{token_and_positional_embedding.1} parent=31 // pred_check
            _
          $region34: #{token_and_positional_embedding.1} parent=31 // pred_check_branch
            %161 = sbr.rel target = $region36
          $region35: #{token_and_positional_embedding.1} parent=31 // pred_region
            %162 = sst [smem:[#allocation12]] [#allocation11]
            %163 = sst [smem:[#allocation13]] [#allocation10]
          $region36: #{token_and_positional_embedding.1} parent=31 // pred_fallthru
            _
          %165 = shalt.err (0)
          %s167 = sshll.u32 %s159, 4
          %s168 = int_to_ptr.hbm [resolvable:$true] %s167
          %s169 = sshll.u32 [#allocation2], 4
          %s170 = int_to_ptr.vmem [resolvable:$true] %s169
          %172 = dma.hbm_to_vmem [thread:$0]  %s168, 16, %s170, [#allocation3]
          %s173 = sadd.s32 %s157, 1
          %s174 = sld [smem:[#allocation5 + %s173]]
          %s175 = scalar_lea.hbm %s1, %s174
          %s176 = scalar_lea.vmem [#allocation2], 1
          // Predicated region
          $region37: #{token_and_positional_embedding.1} parent=31 // pred_check
            _
          $region38: #{token_and_positional_embedding.1} parent=31 // pred_check_branch
            %178 = sbr.rel target = $region40
          $region39: #{token_and_positional_embedding.1} parent=31 // pred_region
            %179 = sst [smem:[#allocation12]] [#allocation15]
            %180 = sst [smem:[#allocation13]] [#allocation14]
          $region40: #{token_and_positional_embedding.1} parent=31 // pred_fallthru
            _
          %182 = shalt.err (0)
          %s184 = sshll.u32 %s175, 4
          %s185 = int_to_ptr.hbm [resolvable:$true] %s184
          %s186 = sshll.u32 %s176, 4
          %s187 = int_to_ptr.vmem [resolvable:$true] %s186
          %189 = dma.hbm_to_vmem [thread:$0]  %s185, 16, %s187, [#allocation3]
          %s190 = sadd.s32 %s157, 2
          %s191 = sld [smem:[#allocation5 + %s190]]
          %s192 = scalar_lea.hbm %s1, %s191
          %s193 = scalar_lea.vmem [#allocation2], 2
          // Predicated region
          $region41: #{token_and_positional_embedding.1} parent=31 // pred_check
            _
          $region42: #{token_and_positional_embedding.1} parent=31 // pred_check_branch
            %195 = sbr.rel target = $region44
          $region43: #{token_and_positional_embedding.1} parent=31 // pred_region
            %196 = sst [smem:[#allocation12]] [#allocation17]
            %197 = sst [smem:[#allocation13]] [#allocation16]
          $region44: #{token_and_positional_embedding.1} parent=31 // pred_fallthru
            _
          %199 = shalt.err (0)
          %s201 = sshll.u32 %s192, 4
          %s202 = int_to_ptr.hbm [resolvable:$true] %s201
          %s203 = sshll.u32 %s193, 4
          %s204 = int_to_ptr.vmem [resolvable:$true] %s203
          %206 = dma.hbm_to_vmem [thread:$0]  %s202, 16, %s204, [#allocation3]
          %s207 = sadd.s32 %s157, 3
          %s208 = sld [smem:[#allocation5 + %s207]]
          %s209 = scalar_lea.hbm %s1, %s208
          %s210 = scalar_lea.vmem [#allocation2], 3
          // Predicated region
          $region45: #{token_and_positional_embedding.1} parent=31 // pred_check
            _
          $region46: #{token_and_positional_embedding.1} parent=31 // pred_check_branch
            %212 = sbr.rel target = $region48
          $region47: #{token_and_positional_embedding.1} parent=31 // pred_region
            %213 = sst [smem:[#allocation12]] [#allocation19]
            %214 = sst [smem:[#allocation13]] [#allocation18]
          $region48: #{token_and_positional_embedding.1} parent=31 // pred_fallthru
            _
          %216 = shalt.err (0)
          %s218 = sshll.u32 %s209, 4
          %s219 = int_to_ptr.hbm [resolvable:$true] %s218
          %s220 = sshll.u32 %s210, 4
          %s221 = int_to_ptr.vmem [resolvable:$true] %s220
          %223 = dma.hbm_to_vmem [thread:$0]  %s219, 16, %s221, [#allocation3]
          %s224 = sadd.s32 %s157, 4
          %s225 = sld [smem:[#allocation5 + %s224]]
          %s226 = scalar_lea.hbm %s1, %s225
          %s227 = scalar_lea.vmem [#allocation2], 4
          // Predicated region
          $region49: #{token_and_positional_embedding.1} parent=31 // pred_check
            _
          $region50: #{token_and_positional_embedding.1} parent=31 // pred_check_branch
            %229 = sbr.rel target = $region52
          $region51: #{token_and_positional_embedding.1} parent=31 // pred_region
            %230 = sst [smem:[#allocation12]] [#allocation21]
            %231 = sst [smem:[#allocation13]] [#allocation20]
          $region52: #{token_and_positional_embedding.1} parent=31 // pred_fallthru
            _
          %233 = shalt.err (0)
          %s235 = sshll.u32 %s226, 4
          %s236 = int_to_ptr.hbm [resolvable:$true] %s235
          %s237 = sshll.u32 %s227, 4
          %s238 = int_to_ptr.vmem [resolvable:$true] %s237
          %240 = dma.hbm_to_vmem [thread:$0]  %s236, 16, %s238, [#allocation3]
          %s241 = sadd.s32 %s157, 5
          %s242 = sld [smem:[#allocation5 + %s241]]
          %s243 = scalar_lea.hbm %s1, %s242
          %s244 = scalar_lea.vmem [#allocation2], 5
          // Predicated region
          $region53: #{token_and_positional_embedding.1} parent=31 // pred_check
            _
          $region54: #{token_and_positional_embedding.1} parent=31 // pred_check_branch
            %246 = sbr.rel target = $region56
          $region55: #{token_and_positional_embedding.1} parent=31 // pred_region
            %247 = sst [smem:[#allocation12]] [#allocation23]
            %248 = sst [smem:[#allocation13]] [#allocation22]
          $region56: #{token_and_positional_embedding.1} parent=31 // pred_fallthru
            _
          %250 = shalt.err (0)
          %s252 = sshll.u32 %s243, 4
          %s253 = int_to_ptr.hbm [resolvable:$true] %s252
          %s254 = sshll.u32 %s244, 4
          %s255 = int_to_ptr.vmem [resolvable:$true] %s254
          %257 = dma.hbm_to_vmem [thread:$0]  %s253, 16, %s255, [#allocation3]
          %s258 = sadd.s32 %s157, 6
          %s259 = sld [smem:[#allocation5 + %s258]]
          %s260 = scalar_lea.hbm %s1, %s259
          %s261 = scalar_lea.vmem [#allocation2], 6
          // Predicated region
          $region57: #{token_and_positional_embedding.1} parent=31 // pred_check
            _
          $region58: #{token_and_positional_embedding.1} parent=31 // pred_check_branch
            %263 = sbr.rel target = $region60
          $region59: #{token_and_positional_embedding.1} parent=31 // pred_region
            %264 = sst [smem:[#allocation12]] [#allocation25]
            %265 = sst [smem:[#allocation13]] [#allocation24]
          $region60: #{token_and_positional_embedding.1} parent=31 // pred_fallthru
            _
          %267 = shalt.err (0)
          %s269 = sshll.u32 %s260, 4
          %s270 = int_to_ptr.hbm [resolvable:$true] %s269
          %s271 = sshll.u32 %s261, 4
          %s272 = int_to_ptr.vmem [resolvable:$true] %s271
          %274 = dma.hbm_to_vmem [thread:$0]  %s270, 16, %s272, [#allocation3]
          %s275 = sadd.s32 %s157, 7
          %s276 = sld [smem:[#allocation5 + %s275]]
          %s277 = scalar_lea.hbm %s1, %s276
          %s278 = scalar_lea.vmem [#allocation2], 7
          // Predicated region
          $region61: #{token_and_positional_embedding.1} parent=31 // pred_check
            _
          $region62: #{token_and_positional_embedding.1} parent=31 // pred_check_branch
            %280 = sbr.rel target = $region64
          $region63: #{token_and_positional_embedding.1} parent=31 // pred_region
            %281 = sst [smem:[#allocation12]] [#allocation27]
            %282 = sst [smem:[#allocation13]] [#allocation26]
          $region64: #{token_and_positional_embedding.1} parent=31 // pred_fallthru
            _
          %284 = shalt.err (0)
          %s286 = sshll.u32 %s277, 4
          %s287 = int_to_ptr.hbm [resolvable:$true] %s286
          %s288 = sshll.u32 %s278, 4
          %s289 = int_to_ptr.vmem [resolvable:$true] %s288
          %291 = dma.hbm_to_vmem [thread:$0]  %s287, 16, %s289, [#allocation3]
        $region32: #{token_and_positional_embedding.1} parent=23 // pred_fallthru
          _
        %s292 = sadd.s32 %s31, 1
        %p293 = scmp.lt.s32.totalorder %s292, 2
        // Predicated region
        $region65: #{token_and_positional_embedding.1} parent=23 // pred_check
          %p294 = pneg %p293
        $region66: #{token_and_positional_embedding.1} parent=23 // pred_check_branch
          %296 = sbr.rel (%p294) target = $region68
        $region67: #{token_and_positional_embedding.1} parent=23 // pred_region
          %s297 = ssub.s32 1, %s152
          %s298 = smul.u32 %s292, 8
          %s299 = smul.u32 %s30, 8
          %s300 = sadd.s32 %s298, %s299
          %s301 = sld [smem:[#allocation5 + %s300]]
          %s302 = scalar_lea.hbm %s1, %s301
          %s303 = smul.u32 %s297, 8
          %s304 = scalar_lea.vmem [#allocation2], %s303
          %s305 = scalar_lea.sflag [#allocation3], %s297
          // Predicated region
          $region69: #{token_and_positional_embedding.1} parent=67 // pred_check
            _
          $region70: #{token_and_positional_embedding.1} parent=67 // pred_check_branch
            %307 = sbr.rel target = $region72
          $region71: #{token_and_positional_embedding.1} parent=67 // pred_region
            %308 = sst [smem:[#allocation12]] [#allocation29]
            %309 = sst [smem:[#allocation13]] [#allocation28]
          $region72: #{token_and_positional_embedding.1} parent=67 // pred_fallthru
            _
          %311 = shalt.err (0)
          %s313 = sshll.u32 %s302, 4
          %s314 = int_to_ptr.hbm [resolvable:$true] %s313
          %s315 = sshll.u32 %s304, 4
          %s316 = int_to_ptr.vmem [resolvable:$true] %s315
          %318 = dma.hbm_to_vmem [thread:$0]  %s314, 16, %s316, %s305
          %s319 = sadd.s32 %s300, 1
          %s320 = sld [smem:[#allocation5 + %s319]]
          %s321 = scalar_lea.hbm %s1, %s320
          %s322 = sadd.s32 1, %s303
          %s323 = scalar_lea.vmem [#allocation2], %s322
          // Predicated region
          $region73: #{token_and_positional_embedding.1} parent=67 // pred_check
            _
          $region74: #{token_and_positional_embedding.1} parent=67 // pred_check_branch
            %325 = sbr.rel target = $region76
          $region75: #{token_and_positional_embedding.1} parent=67 // pred_region
            %326 = sst [smem:[#allocation12]] [#allocation31]
            %327 = sst [smem:[#allocation13]] [#allocation30]
          $region76: #{token_and_positional_embedding.1} parent=67 // pred_fallthru
            _
          %329 = shalt.err (0)
          %s331 = sshll.u32 %s321, 4
          %s332 = int_to_ptr.hbm [resolvable:$true] %s331
          %s333 = sshll.u32 %s323, 4
          %s334 = int_to_ptr.vmem [resolvable:$true] %s333
          %336 = dma.hbm_to_vmem [thread:$0]  %s332, 16, %s334, %s305
          %s337 = sadd.s32 %s300, 2
          %s338 = sld [smem:[#allocation5 + %s337]]
          %s339 = scalar_lea.hbm %s1, %s338
          %s340 = sadd.s32 2, %s303
          %s341 = scalar_lea.vmem [#allocation2], %s340
          // Predicated region
          $region77: #{token_and_positional_embedding.1} parent=67 // pred_check
            _
          $region78: #{token_and_positional_embedding.1} parent=67 // pred_check_branch
            %343 = sbr.rel target = $region80
          $region79: #{token_and_positional_embedding.1} parent=67 // pred_region
            %344 = sst [smem:[#allocation12]] [#allocation33]
            %345 = sst [smem:[#allocation13]] [#allocation32]
          $region80: #{token_and_positional_embedding.1} parent=67 // pred_fallthru
            _
          %347 = shalt.err (0)
          %s349 = sshll.u32 %s339, 4
          %s350 = int_to_ptr.hbm [resolvable:$true] %s349
          %s351 = sshll.u32 %s341, 4
          %s352 = int_to_ptr.vmem [resolvable:$true] %s351
          %354 = dma.hbm_to_vmem [thread:$0]  %s350, 16, %s352, %s305
          %s355 = sadd.s32 %s300, 3
          %s356 = sld [smem:[#allocation5 + %s355]]
          %s357 = scalar_lea.hbm %s1, %s356
          %s358 = sadd.s32 3, %s303
          %s359 = scalar_lea.vmem [#allocation2], %s358
          // Predicated region
          $region81: #{token_and_positional_embedding.1} parent=67 // pred_check
            _
          $region82: #{token_and_positional_embedding.1} parent=67 // pred_check_branch
            %361 = sbr.rel target = $region84
          $region83: #{token_and_positional_embedding.1} parent=67 // pred_region
            %362 = sst [smem:[#allocation12]] [#allocation35]
            %363 = sst [smem:[#allocation13]] [#allocation34]
          $region84: #{token_and_positional_embedding.1} parent=67 // pred_fallthru
            _
          %365 = shalt.err (0)
          %s367 = sshll.u32 %s357, 4
          %s368 = int_to_ptr.hbm [resolvable:$true] %s367
          %s369 = sshll.u32 %s359, 4
          %s370 = int_to_ptr.vmem [resolvable:$true] %s369
          %372 = dma.hbm_to_vmem [thread:$0]  %s368, 16, %s370, %s305
          %s373 = sadd.s32 %s300, 4
          %s374 = sld [smem:[#allocation5 + %s373]]
          %s375 = scalar_lea.hbm %s1, %s374
          %s376 = sadd.s32 4, %s303
          %s377 = scalar_lea.vmem [#allocation2], %s376
          // Predicated region
          $region85: #{token_and_positional_embedding.1} parent=67 // pred_check
            _
          $region86: #{token_and_positional_embedding.1} parent=67 // pred_check_branch
            %379 = sbr.rel target = $region88
          $region87: #{token_and_positional_embedding.1} parent=67 // pred_region
            %380 = sst [smem:[#allocation12]] [#allocation37]
            %381 = sst [smem:[#allocation13]] [#allocation36]
          $region88: #{token_and_positional_embedding.1} parent=67 // pred_fallthru
            _
          %383 = shalt.err (0)
          %s385 = sshll.u32 %s375, 4
          %s386 = int_to_ptr.hbm [resolvable:$true] %s385
          %s387 = sshll.u32 %s377, 4
          %s388 = int_to_ptr.vmem [resolvable:$true] %s387
          %390 = dma.hbm_to_vmem [thread:$0]  %s386, 16, %s388, %s305
          %s391 = sadd.s32 %s300, 5
          %s392 = sld [smem:[#allocation5 + %s391]]
          %s393 = scalar_lea.hbm %s1, %s392
          %s394 = sadd.s32 5, %s303
          %s395 = scalar_lea.vmem [#allocation2], %s394
          // Predicated region
          $region89: #{token_and_positional_embedding.1} parent=67 // pred_check
            _
          $region90: #{token_and_positional_embedding.1} parent=67 // pred_check_branch
            %397 = sbr.rel target = $region92
          $region91: #{token_and_positional_embedding.1} parent=67 // pred_region
            %398 = sst [smem:[#allocation12]] [#allocation39]
            %399 = sst [smem:[#allocation13]] [#allocation38]
          $region92: #{token_and_positional_embedding.1} parent=67 // pred_fallthru
            _
          %401 = shalt.err (0)
          %s403 = sshll.u32 %s393, 4
          %s404 = int_to_ptr.hbm [resolvable:$true] %s403
          %s405 = sshll.u32 %s395, 4
          %s406 = int_to_ptr.vmem [resolvable:$true] %s405
          %408 = dma.hbm_to_vmem [thread:$0]  %s404, 16, %s406, %s305
          %s409 = sadd.s32 %s300, 6
          %s410 = sld [smem:[#allocation5 + %s409]]
          %s411 = scalar_lea.hbm %s1, %s410
          %s412 = sadd.s32 6, %s303
          %s413 = scalar_lea.vmem [#allocation2], %s412
          // Predicated region
          $region93: #{token_and_positional_embedding.1} parent=67 // pred_check
            _
          $region94: #{token_and_positional_embedding.1} parent=67 // pred_check_branch
            %415 = sbr.rel target = $region96
          $region95: #{token_and_positional_embedding.1} parent=67 // pred_region
            %416 = sst [smem:[#allocation12]] [#allocation41]
            %417 = sst [smem:[#allocation13]] [#allocation40]
          $region96: #{token_and_positional_embedding.1} parent=67 // pred_fallthru
            _
          %419 = shalt.err (0)
          %s421 = sshll.u32 %s411, 4
          %s422 = int_to_ptr.hbm [resolvable:$true] %s421
          %s423 = sshll.u32 %s413, 4
          %s424 = int_to_ptr.vmem [resolvable:$true] %s423
          %426 = dma.hbm_to_vmem [thread:$0]  %s422, 16, %s424, %s305
          %s427 = sadd.s32 %s300, 7
          %s428 = sld [smem:[#allocation5 + %s427]]
          %s429 = scalar_lea.hbm %s1, %s428
          %s430 = sadd.s32 7, %s303
          %s431 = scalar_lea.vmem [#allocation2], %s430
          // Predicated region
          $region97: #{token_and_positional_embedding.1} parent=67 // pred_check
            _
          $region98: #{token_and_positional_embedding.1} parent=67 // pred_check_branch
            %433 = sbr.rel target = $region100
          $region99: #{token_and_positional_embedding.1} parent=67 // pred_region
            %434 = sst [smem:[#allocation12]] [#allocation43]
            %435 = sst [smem:[#allocation13]] [#allocation42]
          $region100: #{token_and_positional_embedding.1} parent=67 // pred_fallthru
            _
          %437 = shalt.err (0)
          %s439 = sshll.u32 %s429, 4
          %s440 = int_to_ptr.hbm [resolvable:$true] %s439
          %s441 = sshll.u32 %s431, 4
          %s442 = int_to_ptr.vmem [resolvable:$true] %s441
          %444 = dma.hbm_to_vmem [thread:$0]  %s440, 16, %s442, %s305
        $region68: #{token_and_positional_embedding.1} parent=23 // pred_fallthru
          _
        %s445 = scalar_lea.sflag [#allocation3], %s152
        %s446 = smul.u32 1, 1
        %s447 = sshll.u32 %s446, 4
        %448 = dma.done %s445, %s447
        %s449 = sshll.u32 %s446, 4
        %450 = dma.done %s445, %s449
        %s451 = sshll.u32 %s446, 4
        %452 = dma.done %s445, %s451
        %s453 = sshll.u32 %s446, 4
        %454 = dma.done %s445, %s453
        %s455 = sshll.u32 %s446, 4
        %456 = dma.done %s445, %s455
        %s457 = sshll.u32 %s446, 4
        %458 = dma.done %s445, %s457
        %s459 = sshll.u32 %s446, 4
        %460 = dma.done %s445, %s459
        %s461 = sshll.u32 %s446, 4
        %462 = dma.done %s445, %s461
        %s463 = smul.u32 %s152, 8
        %s464 = scalar_lea.vmem [#allocation2], %s463
        %v465 = vld [vmem:[%s464] sm:$0xff]
        %v466 = vld [vmem:[#allocation6] sm:$0xff]
        %v467 = vadd.f32 %v465, %v466
        %468 = vst [vmem:[%s140] sm:$0xff] %v467
        %s469 = sand.u32 %s74, 1
        %s470 = scalar_lea.sflag [#allocation8], %s469
        %s471 = sand.u32 %s74, 1
        %s472 = smul.addr %s471, 8
        %s473 = scalar_lea.vmem [#allocation9], %s472
        // Predicated region
        $region101: #{token_and_positional_embedding.1} parent=23 // pred_check
          %p474 = pneg %p84
        $region102: #{token_and_positional_embedding.1} parent=23 // pred_check_branch
          %476 = sbr.rel (%p474) target = $region104
        $region103: #{token_and_positional_embedding.1} parent=23 // pred_region
          %478 = vsyncadd %s470, 0
          %s479 = sadd.s32 %s30, %s31
          %s480 = smul.addr %s479, 8
          %s481 = scalar_lea.hbm %s3, %s480
          %s483 = sshll.u32 %s473, 4
          %s484 = int_to_ptr.vmem [resolvable:$true] %s483
          %s485 = sshll.u32 %s481, 4
          %s486 = int_to_ptr.hbm [resolvable:$true] %s485
          %488 = dma.vmem_to_hbm [thread:$0]  %s484, 128, %s486, %s470
        $region104: #{token_and_positional_embedding.1} parent=23 // pred_fallthru
          _
      $region24: #{token_and_positional_embedding.1} parent=5 // pred_fallthru
        _
      %p489 = scmp.le.s32.totalorder 2, %s21
      // Predicated region
      $region105: #{token_and_positional_embedding.1} parent=5 // pred_check
        %p490 = pneg %p489
      $region106: #{token_and_positional_embedding.1} parent=5 // pred_check_branch
        %492 = sbr.rel (%p490) target = $region108
      $region107: #{token_and_positional_embedding.1} parent=5 // pred_region
        %s493 = ssub.s32 %s21, 2
        // Predicated region
        $region109: #{token_and_positional_embedding.1} parent=107 // pred_check
          %p494 = pneg %p90
        $region110: #{token_and_positional_embedding.1} parent=107 // pred_check_branch
          %496 = sbr.rel (%p494) target = $region112
        $region111: #{token_and_positional_embedding.1} parent=107 // pred_region
          %s497 = sand.u32 %s75, 1
          %s498 = scalar_lea.sflag [#allocation8], %s497
          %s499 = sand.u32 %s75, 1
          %s500 = smul.addr %s499, 8
          %s501 = scalar_lea.vmem [#allocation9], %s500
          %503 = dma.done %s498, 128
        $region112: #{token_and_positional_embedding.1} parent=107 // pred_fallthru
          _
      $region108: #{token_and_positional_embedding.1} parent=5 // pred_fallthru
        _
    $region6: #{token_and_positional_embedding.1} parent=1 // loop_footer
      %s25 = sadd.s32 1, %s21
    $region7: #{token_and_positional_embedding.1} parent=1 // loop_footer_branch
      %20 = sbr.rel target = $region3
    $region8: #{token_and_positional_embedding.1} parent=1 // loop_exit
      _
    %504 = vsyncpa [#allocation7], 1
    %s505 = scalar_lea.sflag [#allocation7], 1
    %506 = vsyncpa %s505, 1
    %507 = vsyncpa [#allocation8], 1
    %s508 = scalar_lea.sflag [#allocation8], 1
    %509 = vsyncpa %s508, 1
  %510 = vsyncmov [#allocation3]
  %s511 = vpop.sfrf %510
  %p512 = scmp.eq.s32.totalorder %s511, 0
  %p513 = pneg %p512
  %515 = shalt.err (%p513)
  %s516 = scalar_lea.sflag [#allocation3], 1
  %517 = vsyncmov %s516
  %s518 = vpop.sfrf %517
  %p519 = scmp.eq.s32.totalorder %s518, 0
  %p520 = pneg %p519
  %522 = shalt.err (%p520)

</llo_original>
